<compile_context>
chip_gen: v7x
topology: tpu7x:2x2x1
jax: 0.10.0
libtpu: 0.0.40
codegen_flags: <defaults>
</compile_context>

<pallas_src>
import jax
import jax.numpy as jnp
from jax.experimental import pallas as pl
from jax.experimental.pallas import tpu as pltpu


def _node_attention_kernel(x_ref, a_ref, o_ref):
    # x_ref: (TB, N*F) lane-dense tile of the flattened input
    # a_ref: (1,  N*F) pre-broadcast per-node scales (resident across steps)
    # o_ref: (TB, N*F)
    o_ref[...] = x_ref[...] * a_ref[...]


def _pick_tb(B, NF, itemsize):
    """Row-block size: biggest tile that fits the VMEM budget, split evenly.

    Constraints honored:
      - 2 input + 2 output pipelined buffers of TB*NF*itemsize each must stay
        within a conservative VMEM budget (works on v5e/v6e/v7x).
      - TB is a multiple of 8 sublanes, or equal to the full batch dim.
      - For moderate/large B, produce an even number of >=2 grid steps so
        v7x's two TensorCores both get work.
      - Avoid a mostly-padded ragged final block where possible.
    """
    try:
        vmem_cap = pltpu.get_tpu_info().vmem_capacity_bytes
    except Exception:  # pragma: no cover - info query unavailable
        vmem_cap = 64 << 20
    # Use at most half of physical VMEM for the 4 pipelined buffers, and never
    # more than 24 MiB (TB=2048 at NF=768 f32) — beyond that the tile-size
    # benefit is negligible and v7x headroom disappears.
    budget = min(vmem_cap // 2, 24 << 20)
    tb_vmem = max(8, budget // (4 * NF * itemsize))
    tb_cap = min(2048, (tb_vmem // 8) * 8)

    if B <= tb_cap:
        # Whole batch fits in one tile.  If it's big enough to be worth
        # sharding across v7x's 2 TensorCores and splits cleanly, use 2 steps.
        if B >= 64 and B % 16 == 0:
            return B // 2
        return B  # single block; block_shape == full dim is always legal

    # Large batch: even number of steps, TB a multiple of 8.
    n_steps = pl.cdiv(B, tb_cap)
    if n_steps % 2:
        n_steps += 1
    tb = -(-B // n_steps)          # ceil-div
    tb = ((tb + 7) // 8) * 8       # sublane alignment
    return max(8, min(tb, tb_cap))


def node_attention(x, alphas, num_nodes=48, feat=16, force_pallas=False):
    """Pallas implementation of NodeAttention.forward.

    x:      (B, N, F) or (B, N*16)
    alphas: (N,)
    Returns (B, N, F) (matches the torch module's rebinding quirk for 2D input).
    """
    if x.ndim == 2:
        # Matches the torch module: view(B, 48, 16); output remains 3D.
        x = x.reshape(x.shape[0], num_nodes, feat)

    B, N, F = x.shape
    NF = N * F

    # Torch-style dtype promotion (parameter is typically f32).
    out_dtype = jnp.promote_types(x.dtype, alphas.dtype)
    itemsize = jnp.dtype(out_dtype).itemsize

    # Lane-dense flattened views (free contiguous reshapes, outside the kernel).
    x_flat = x.astype(out_dtype).reshape(B, NF)
    a_row = jnp.broadcast_to(
        alphas.astype(out_dtype)[:, None], (N, F)
    ).reshape(1, NF)

    total_bytes = B * NF * itemsize
    if not force_pallas and total_bytes < (256 << 10):
        # Tiny input: custom-call launch overhead dwarfs the copy; let XLA fuse.
        out_flat = x_flat * a_row
        return out_flat.reshape(B, N, F)

    TB = _pick_tb(B, NF, itemsize)
    grid = (pl.cdiv(B, TB),)

    # Pipelined VMEM need: 2 input + 2 output tiles + the resident scale row.
    needed_vmem = 4 * TB * NF * itemsize + NF * itemsize + (4 << 20)
    vmem_limit = int(min(48 << 20, max(16 << 20, needed_vmem)))

    out_flat = pl.pallas_call(
        _node_attention_kernel,
        out_shape=jax.ShapeDtypeStruct((B, NF), out_dtype),
        grid_spec=pltpu.PrefetchScalarGridSpec(
            num_scalar_prefetch=0,
            grid=grid,
            in_specs=[
                pl.BlockSpec((TB, NF), lambda i: (i, 0)),
                pl.BlockSpec((1, NF), lambda i: (0, 0)),
            ],
            out_specs=pl.BlockSpec((TB, NF), lambda i: (i, 0)),
        ),
        compiler_params=pltpu.CompilerParams(
            dimension_semantics=("parallel",),
            vmem_limit_bytes=vmem_limit,
        ),
        cost_estimate=pl.CostEstimate(
            flops=B * NF,
            transcendentals=0,
            bytes_accessed=(2 * B * NF + NF) * itemsize,
        ),
    )(x_flat, a_row)

    return out_flat.reshape(B, N, F)


if __name__ == "__main__":
    key = jax.random.PRNGKey(0)
    B, N, F = 2, 48, 16

    kx, ka, kb = jax.random.split(key, 3)
    alphas = 1.0 + 0.01 * jnp.arange(N, dtype=jnp.float32)

    # --- 3D input, force the Pallas path so the kernel itself is exercised ---
    x3 = jax.random.normal(kx, (B, N, F), dtype=jnp.float32)
    out3 = node_attention(x3, alphas, force_pallas=True)
    jax.block_until_ready(out3)
    ref3 = x3 * alphas.reshape(1, N, 1)
    assert out3.shape == (B, N, F)
    assert jnp.allclose(out3, ref3, atol=1e-6), "3D case mismatch"

    # --- 2D input (B, 768) -> internally (B, 48, 16); output stays 3D (torch quirk) ---
    x2 = jax.random.normal(ka, (B, N * F), dtype=jnp.float32)
    out2 = node_attention(x2, alphas, force_pallas=True)
    jax.block_until_ready(out2)
    ref2 = x2.reshape(B, N, F) * alphas.reshape(1, N, 1)
    assert out2.shape == (B, N, F)
    assert jnp.allclose(out2, ref2, atol=1e-6), "2D case mismatch"

    # --- Auto-dispatch path at the tiny shipped size (plain jnp multiply) ---
    out_auto = node_attention(x3, alphas)
    jax.block_until_ready(out_auto)
    assert jnp.allclose(out_auto, ref3, atol=1e-6), "auto-dispatch mismatch"

    # --- Larger batch: exercises the multi-step parallel grid (2 x 512 rows) ---
    Bl = 1024
    xl = jax.random.normal(kb, (Bl, N, F), dtype=jnp.float32)
    outl = node_attention(xl, alphas)
    jax.block_until_ready(outl)
    refl = xl * alphas.reshape(1, N, 1)
    assert outl.shape == (Bl, N, F)
    assert jnp.allclose(outl, refl, atol=1e-6), "large-batch case mismatch"

    print("KERNEL_OK")
</pallas_src>

<mosaic_0001>
module attributes {stable_mosaic.version = 11 : i64} {
  func.func @_node_attention_kernel(%arg0: i32, %arg1: memref<2x768xf32, #tpu.memory_space<vmem>>, %arg2: memref<1x768xf32, #tpu.memory_space<vmem>>, %arg3: memref<2x768xf32, #tpu.memory_space<vmem>>) attributes {dimension_semantics = [#tpu.dimension_semantics<parallel>], iteration_bounds = array<i64: 1>, scalar_prefetch = 0 : i64, scratch_operands = 0 : i64, tpu.core_type = #tpu.core_type<tc>, window_params = [{transform_indices = @transform_0, window_bounds = array<i64: 2, 768>}, {pipeline_mode = #tpu.pipeline_mode<synchronous>, transform_indices = @transform_1, window_bounds = array<i64: 1, 768>}, {transform_indices = @transform_2, window_bounds = array<i64: 2, 768>}]} {
    %c0 = arith.constant 0 : index
    %c0_0 = arith.constant 0 : index
    %0 = vector.load %arg1[%c0, %c0_0] : memref<2x768xf32, #tpu.memory_space<vmem>>, vector<2x768xf32>
    %c0_1 = arith.constant 0 : index
    %c0_2 = arith.constant 0 : index
    %1 = vector.load %arg2[%c0_1, %c0_2] : memref<1x768xf32, #tpu.memory_space<vmem>>, vector<1x768xf32>
    %2 = vector.broadcast %1 : vector<1x768xf32> to vector<2x768xf32>
    %3 = arith.mulf %0, %2 : vector<2x768xf32>
    %c0_3 = arith.constant 0 : index
    %c0_4 = arith.constant 0 : index
    %4 = vector.load %arg3[%c0_3, %c0_4] : memref<2x768xf32, #tpu.memory_space<vmem>>, vector<2x768xf32>
    tpu.vector_store %arg3[%c0_3, %c0_4], %3 {strides = array<i32>} : memref<2x768xf32, #tpu.memory_space<vmem>>, vector<2x768xf32>,
    return
  }
  func.func @transform_0(%arg0: i32) -> (i32, i32) {
    %c0_i32 = arith.constant 0 : i32
    %c0_i32_0 = arith.constant 0 : i32
    return %arg0, %c0_i32 : i32, i32
  }
  func.func @transform_1(%arg0: i32) -> (i32, i32) {
    %c0_i32 = arith.constant 0 : i32
    %c0_i32_0 = arith.constant 0 : i32
    %c0_i32_1 = arith.constant 0 : i32
    return %c0_i32, %c0_i32_0 : i32, i32
  }
  func.func @transform_2(%arg0: i32) -> (i32, i32) {
    %c0_i32 = arith.constant 0 : i32
    %c0_i32_0 = arith.constant 0 : i32
    return %arg0, %c0_i32 : i32, i32
  }
}

</mosaic_0001>

<llo_original>
// kernel: tpu_custom_call.1
$region0: #{tpu_custom_call.1}
  #allocation0 [shape = 'u32[]', space=smem, size = 0x4, offset = 0x4, fixed_abs, tag = 'smem constant byte address 0x4 - core index']
  #allocation1 [shape = 'u32[144,128]{1,0:T(1,128)}', space=vmem, size = 0x12000, scoped, tag = 'internal scratch']
  %s0 = inlined_call_operand.hbm [shape: f32[2,768], index: 0, kind: input, shape index: {}]
  %s1 = inlined_call_operand.hbm [shape: f32[1,768], index: 1, kind: input, shape index: {}]
  %s2 = inlined_call_operand.hbm [shape: f32[2,768], index: 2, kind: output, shape index: {}]
  %s3 = sld [smem:[#allocation0]]
  $region26: #{tpu_custom_call.1} parent=0
    _
  %s5 = ssub.s32 1, %s3
  %s6 = scalar_select 0, %s5, %s3
  $region1: #{tpu_custom_call.1} parent=0
    #allocation2 [shape = 'u8[6144]{0}', space=vmem, size = 0x1800, scoped, tag = 'input window, operand 0, single buffered']
    #allocation3 [shape = 's32[1]{0}', space=sflag, size = 0x4, scoped, tag = 'scoped memory for tpu_custom_call.1']
    #allocation4 [shape = 's32[1]{0}', space=sflag, size = 0x4, scoped, tag = 'scoped memory for tpu_custom_call.1']
    #allocation5 [shape = 'u8[3072]{0}', space=vmem, size = 0xc00, scoped, tag = 'input window, operand 1, single buffered']
    #allocation6 [shape = 's32[1]{0}', space=sflag, size = 0x4, scoped, tag = 'scoped memory for tpu_custom_call.1']
    #allocation7 [shape = 'u8[6144]{0}', space=vmem, size = 0x1800, scoped, tag = 'output window, operand 0, single buffered']
    %7 = vsyncpa [#allocation3], 0
    %8 = vsyncpa [#allocation6], 0
    %9 = vsyncpa [#allocation4], 0
    // Predicated region
    $region2: #{tpu_custom_call.1} parent=1 // pred_check
      _
    $region3: #{tpu_custom_call.1} parent=1 // pred_check_branch
      %11 = sbr.rel (0) target = $region5
    $region4: #{tpu_custom_call.1} parent=1 // pred_region
      %s13 = ssub.s32 192, 192
      %14 = vsyncadd [#allocation3], %s13
      %s16 = sshll.u32 [#allocation2], 4
      %s17 = int_to_ptr.vmem [resolvable:$true] %s16
      %19 = dma.hbm_to_vmem [thread:$0]  %s0, 192, %s17, [#allocation3]
    $region5: #{tpu_custom_call.1} parent=1 // pred_fallthru
      _
    // Predicated region
    $region6: #{tpu_custom_call.1} parent=1 // pred_check
      _
    $region7: #{tpu_custom_call.1} parent=1 // pred_check_branch
      %21 = sbr.rel (0) target = $region9
    $region8: #{tpu_custom_call.1} parent=1 // pred_region
      %s23 = ssub.s32 96, 96
      %24 = vsyncadd [#allocation6], %s23
      %s26 = sshll.u32 [#allocation5], 4
      %s27 = int_to_ptr.vmem [resolvable:$true] %s26
      %29 = dma.hbm_to_vmem [thread:$0]  %s1, 96, %s27, [#allocation6]
    $region9: #{tpu_custom_call.1} parent=1 // pred_fallthru
      _
    // Predicated region
    $region10: #{tpu_custom_call.1} parent=1 // pred_check
      _
    $region11: #{tpu_custom_call.1} parent=1 // pred_check_branch
      %31 = sbr.rel (0) target = $region13
    $region12: #{tpu_custom_call.1} parent=1 // pred_region
      %32 = dma.done [#allocation3], 192
    $region13: #{tpu_custom_call.1} parent=1 // pred_fallthru
      _
    // Predicated region
    $region14: #{tpu_custom_call.1} parent=1 // pred_check
      _
    $region15: #{tpu_custom_call.1} parent=1 // pred_check_branch
      %34 = sbr.rel (0) target = $region17
    $region16: #{tpu_custom_call.1} parent=1 // pred_region
      %35 = dma.done [#allocation6], 96
    $region17: #{tpu_custom_call.1} parent=1 // pred_fallthru
      _
    %v36 = vld [vmem:[#allocation2] sm:$0xff]
    %v37 = vld [vmem:[#allocation2 + $0x8] sm:$0xf]
    %v38 = vld [vmem:[#allocation5] sm:$0x3f]
    %v40 = vlaneseq
    %v41 = vshrl.u32 %v40, 7
    %v42 = vsub.s32 0, %v41
    %v43 = vrot.slane %v38, %v42
    %v44 = vlaneseq
    %v45 = vshrl.u32 %v44, 7
    %v46 = vsub.s32 1, %v45
    %v47 = vrot.slane %v38, %v46
    %v48 = vlaneseq
    %v49 = vshrl.u32 %v48, 7
    %v50 = vsub.s32 2, %v49
    %v51 = vrot.slane %v38, %v50
    %v52 = vlaneseq
    %v53 = vshrl.u32 %v52, 7
    %v54 = vsub.s32 3, %v53
    %v55 = vrot.slane %v38, %v54
    %v56 = vlaneseq
    %v57 = vshrl.u32 %v56, 7
    %v58 = vsub.s32 4, %v57
    %v59 = vrot.slane %v38, %v58
    %v60 = vlaneseq
    %v61 = vshrl.u32 %v60, 7
    %v62 = vsub.s32 5, %v61
    %v63 = vrot.slane %v38, %v62
    %v64 = vcombine.low %v43, %v47
    %v65 = vcombine.low %v51, %v55
    %v67 = vunpack.c.l.s4 1983009808
    %v68 = vunpack.c.0.s8 %v67
    %v69 = vlaneseq
    %v70 = vshrl.u32 %v69, 7
    %v71 = vsub.s32 %v68, %v70
    %v72 = vrot.slane %v64, %v71
    %v74 = vunpack.c.l.s4 1983009808
    %v75 = vunpack.c.0.s8 %v74
    %v76 = vlaneseq
    %v77 = vshrl.u32 %v76, 7
    %v78 = vsub.s32 %v75, %v77
    %v79 = vrot.slane %v65, %v78
    %v80 = vcombine.low %v72, %v79
    %v81 = vcombine.low %v59, %v63
    %v83 = vunpack.c.l.s4 1983009808
    %v84 = vunpack.c.0.s8 %v83
    %v85 = vlaneseq
    %v86 = vshrl.u32 %v85, 7
    %v87 = vsub.s32 %v84, %v86
    %v88 = vrot.slane %v81, %v87
    %v91 = vmul.f32 %v36, %v80
    %v92 = vmul.f32 %v37, %v88
    %93 = vst [vmem:[#allocation7] sm:$0xff] %v91
    %94 = vst [vmem:[#allocation7 + $0x8] sm:$0xf] %v92
    // Predicated region
    $region18: #{tpu_custom_call.1} parent=1 // pred_check
      _
    $region19: #{tpu_custom_call.1} parent=1 // pred_check_branch
      %96 = sbr.rel (0) target = $region21
    $region20: #{tpu_custom_call.1} parent=1 // pred_region
      %s98 = ssub.s32 192, 192
      %99 = vsyncadd [#allocation4], %s98
      %s101 = sshll.u32 [#allocation7], 4
      %s102 = int_to_ptr.vmem [resolvable:$true] %s101
      %104 = dma.vmem_to_hbm [thread:$0]  %s102, 192, %s2, [#allocation4]
    $region21: #{tpu_custom_call.1} parent=1 // pred_fallthru
      _
    // Predicated region
    $region22: #{tpu_custom_call.1} parent=1 // pred_check
      _
    $region23: #{tpu_custom_call.1} parent=1 // pred_check_branch
      %106 = sbr.rel (0) target = $region25
    $region24: #{tpu_custom_call.1} parent=1 // pred_region
      %107 = dma.done [#allocation4], 192
    $region25: #{tpu_custom_call.1} parent=1 // pred_fallthru
      _
    %108 = vsyncpa [#allocation3], 1
    %109 = vsyncpa [#allocation6], 1
    %110 = vsyncpa [#allocation4], 1

</llo_original>
